<compile_context>
chip_gen: v7x
topology: tpu7x:2x2x1
jax: 0.10.0
libtpu: 0.0.40
codegen_flags: <defaults>
</compile_context>

<pallas_src>
import jax
import jax.numpy as jnp
from jax import lax
from jax.experimental import pallas as pl
from jax.experimental.pallas import tpu as pltpu


def _round_up(x, m):
    return ((x + m - 1) // m) * m


def _cdiv(a, b):
    return -(-a // b)


def _vmem_per_row(c, itemsize, class_on_sublanes, has_alpha):
    """Modelled VMEM bytes per sample row (double-buffered inputs + temporaries)."""
    lanes_c = _round_up(c, 128)                      # (tile_n, C) blocks lane-pad C->128
    if class_on_sublanes:
        x_in = 2 * lanes_c * itemsize                # x blocks, 2 buffers
        tgt = 2 * 8 * 4                              # (1, tile_n) i32, sublane pad to 8
        alp = (2 * 8 * 4) if has_alpha else 0
        acc = 8 * 4                                  # (1, tile_n) f32 accumulator
        interm = lanes_c * 4 + 8 * _round_up(c, 8) * 4   # padded f32 copy + (C,tile_n) temps
    else:
        x_in = 2 * lanes_c * itemsize
        tgt = 2 * 128 * 4                            # (tile_n, 1) i32 lane-pads to 128
        alp = (2 * 128 * 4) if has_alpha else 0
        acc = 128 * 4
        interm = 8 * lanes_c * 4                     # (tile_n, C) f32 temporaries
    return x_in + tgt + alp + acc + interm


def _choose_tile_n(n, per_row, budget, unit):
    """Largest tile that fits the VMEM budget, keeping >=3 steps for pipelining."""
    fit = max(unit, (budget // max(per_row, 1)) // unit * unit)
    if fit >= n:
        if n >= 4 * unit:                            # split into ~4 steps for DMA overlap
            return _round_up(_cdiv(n, 4), unit)
        return n                                     # single block == whole array (exact)
    if _cdiv(n, fit) < 3:
        fit = max(unit, min(fit, _round_up(_cdiv(n, 3), unit)))
    return fit


def _make_focal_kernel(*, num_classes, gamma, label_smoothing, n_valid, tile_n,
                       steps_per_split, class_on_sublanes, has_alpha, needs_mask):
    gamma = float(gamma)
    label_smoothing = float(label_smoothing)

    def kernel(*refs):
        if has_alpha:
            x_ref, t_ref, a_ref, out_ref, acc_ref = refs
        else:
            x_ref, t_ref, out_ref, acc_ref = refs
            a_ref = None

        p = pl.program_id(0)   # parallel split (one per TensorCore on v7x)
        s = pl.program_id(1)   # reduction steps within a split

        @pl.when(s == 0)
        def _():
            acc_ref[...] = jnp.zeros_like(acc_ref)

        x = x_ref[...]                               # natural (tile_n, C) block
        if class_on_sublanes:
            # Small C: relayout to (C, tile_n) in-kernel (XLU is idle) so the exp /
            # compare / select work is lane-dense.  No wrapper-side HBM pass.
            xt = jnp.transpose(x.astype(jnp.float32))
            caxis = 0
        else:
            xt = x.astype(jnp.float32)               # classes already on lanes
            caxis = 1

        t = t_ref[...]                               # (1,tile_n) or (tile_n,1) int32

        # Numerically stable log-softmax pieces over the class axis.
        m = jnp.max(xt, axis=caxis, keepdims=True)
        shifted = xt - m
        sum_exp = jnp.sum(jnp.exp(shifted), axis=caxis, keepdims=True)
        lse = jnp.log(sum_exp)

        # True-class logit via boolean select (no bool->f32 cast or extra multiply).
        is_true = lax.broadcasted_iota(jnp.int32, xt.shape, caxis) == t
        shifted_true = jnp.sum(jnp.where(is_true, shifted, 0.0),
                               axis=caxis, keepdims=True)
        log_pt_true = shifted_true - lse
        pt_true = jnp.exp(log_pt_true)

        if label_smoothing > 0.0:
            # Module semantics: off-class prob = ls/(C-1), true class = 1-ls.
            # base = -[(1-ls-off)*log_pt_true + off*(sum(shifted) - C*lse)]
            off = label_smoothing / (num_classes - 1)
            sum_log_pt = (jnp.sum(shifted, axis=caxis, keepdims=True)
                          - float(num_classes) * lse)
            base_loss = -((1.0 - label_smoothing - off) * log_pt_true
                          + off * sum_log_pt)
        else:
            base_loss = -log_pt_true                 # plain CE of the true class

        one_minus_pt = jnp.maximum(1.0 - pt_true, 0.0)   # clamp fp noise
        if gamma == 0.0:
            loss = base_loss
        elif gamma.is_integer():
            loss = lax.integer_pow(one_minus_pt, int(gamma)) * base_loss
        else:
            loss = jnp.power(one_minus_pt, jnp.float32(gamma)) * base_loss

        if has_alpha:
            loss = a_ref[...].astype(jnp.float32) * loss   # per-row alpha_t

        if needs_mask:
            # Edge/overhang blocks contain garbage rows (logits are NOT padded in
            # HBM); where() does not propagate their NaN/Inf into the sum.
            samp_axis = 1 - caxis
            samp = lax.broadcasted_iota(jnp.int32, loss.shape, samp_axis)
            row0 = (p * steps_per_split + s) * tile_n
            loss = jnp.where(row0 + samp < n_valid, loss, 0.0)

        acc_ref[...] += loss                         # pure VPU accumulation

        @pl.when(s == steps_per_split - 1)
        def _():
            total = jnp.sum(acc_ref[...])
            rr = lax.broadcasted_iota(jnp.int32, (8, 128), 0)
            cc = lax.broadcasted_iota(jnp.int32, (8, 128), 1)
            out_ref[...] = jnp.where((rr == 0) & (cc == 0), total, 0.0)

    return kernel


def focal_loss(inputs, targets, alpha=None, gamma=2.0, label_smoothing=0.0,
               reduction="mean", tile_n=None):
    """inputs: (N, C) logits (f32 or bf16); targets: (N,) int class ids."""
    if reduction not in ("mean", "sum"):
        # TODO(synk): reduction='none' needs an (N,)-shaped per-sample output path.
        raise NotImplementedError("reduction must be 'mean' or 'sum'")

    n, c = inputs.shape
    itemsize = jnp.dtype(inputs.dtype).itemsize
    has_alpha = alpha is not None

    class_on_sublanes = c < 128            # small C: lane-dense (C, tile_n) compute
    unit = 128 if class_on_sublanes else 8

    # Per-generation VMEM capacity (64 MiB/TC on v7x, 128 MiB on v5e/v6e).
    try:
        cap = int(getattr(pltpu.get_tpu_info(), "vmem_capacity_bytes", 64 * 2**20))
    except Exception:
        cap = 64 * 2**20                   # conservative fallback, safe everywhere
    budget = int(cap * 0.35)

    per_row = _vmem_per_row(c, itemsize, class_on_sublanes, has_alpha)

    if tile_n is None:
        tile_n = _choose_tile_n(n, per_row, budget, unit)
    else:
        tile_n = max(unit, _round_up(int(tile_n), unit))
        if tile_n >= n:
            tile_n = n

    nblocks = _cdiv(n, tile_n)
    num_splits = 2 if nblocks >= 4 else 1      # >= 2 pipelined steps per split
    steps_per_split = _cdiv(nblocks, num_splits)
    coverage = num_splits * steps_per_split * tile_n
    needs_mask = coverage != n
    last_block = nblocks - 1

    # Only the tiny per-sample vectors are padded; the logits are never copied.
    targets_i32 = targets.astype(jnp.int32)
    if coverage != n:
        targets_i32 = jnp.concatenate(
            [targets_i32, jnp.zeros((coverage - n,), jnp.int32)])
    if has_alpha:
        alpha_rows = jnp.asarray(alpha, jnp.float32).reshape(c)[targets_i32]

    if class_on_sublanes:
        t_arg = targets_i32.reshape(1, coverage)
        t_spec = pl.BlockSpec((1, tile_n), lambda p, s: (0, p * steps_per_split + s))
        acc_shape = (1, tile_n)
        if has_alpha:
            a_arg = alpha_rows.reshape(1, coverage)
            a_spec = pl.BlockSpec((1, tile_n),
                                  lambda p, s: (0, p * steps_per_split + s))
    else:
        t_arg = targets_i32.reshape(coverage, 1)
        t_spec = pl.BlockSpec((tile_n, 1), lambda p, s: (p * steps_per_split + s, 0))
        acc_shape = (tile_n, 1)
        if has_alpha:
            a_arg = alpha_rows.reshape(coverage, 1)
            a_spec = pl.BlockSpec((tile_n, 1),
                                  lambda p, s: (p * steps_per_split + s, 0))

    # Natural (tile_n, C) logits blocks; overhang grid steps are clamped onto the
    # last real block (their contribution is fully masked in-kernel).
    x_spec = pl.BlockSpec(
        (tile_n, c),
        lambda p, s: (jnp.minimum(p * steps_per_split + s, last_block), 0))

    in_specs = [x_spec, t_spec]
    args = [inputs, t_arg]
    if has_alpha:
        in_specs.append(a_spec)
        args.append(a_arg)

    kernel = _make_focal_kernel(
        num_classes=c, gamma=gamma, label_smoothing=label_smoothing, n_valid=n,
        tile_n=tile_n, steps_per_split=steps_per_split,
        class_on_sublanes=class_on_sublanes, has_alpha=has_alpha,
        needs_mask=needs_mask)

    modeled = per_row * tile_n + (1 << 20)
    vmem_limit = max(32 * 2**20, modeled * 3 // 2 + (4 << 20))
    vmem_limit = int(min(vmem_limit, cap - (8 << 20)))

    partials = pl.pallas_call(
        kernel,
        out_shape=jax.ShapeDtypeStruct((8 * num_splits, 128), jnp.float32),
        grid_spec=pltpu.PrefetchScalarGridSpec(
            num_scalar_prefetch=0,
            grid=(num_splits, steps_per_split),
            in_specs=in_specs,
            out_specs=pl.BlockSpec((8, 128), lambda p, s: (p, 0)),
            scratch_shapes=[pltpu.VMEM(acc_shape, jnp.float32)],
        ),
        compiler_params=pltpu.CompilerParams(
            dimension_semantics=("parallel", "arbitrary"),
            vmem_limit_bytes=vmem_limit,
        ),
    )(*args)

    total = jnp.sum(partials)
    if reduction == "sum":
        return total
    return total / jnp.float32(n)


def _focal_loss_ref(inputs, targets, alpha=None, gamma=2.0, label_smoothing=0.0):
    """Pure-JAX reference mirroring the PyTorch module (reduction='mean')."""
    n, c = inputs.shape
    log_pt = jax.nn.log_softmax(inputs.astype(jnp.float32), axis=1)
    pt = jnp.exp(log_pt)
    onehot = jax.nn.one_hot(targets, c, dtype=jnp.float32)
    if label_smoothing > 0:
        smoothed = onehot * (1.0 - label_smoothing) + (1.0 - onehot) * (
            label_smoothing / (c - 1))
    else:
        smoothed = onehot
    pt_true = jnp.sum(onehot * pt, axis=1)
    base_loss = -jnp.sum(smoothed * log_pt, axis=1)
    loss = (1.0 - pt_true) ** gamma * base_loss
    if alpha is not None:
        loss = jnp.asarray(alpha, jnp.float32)[targets] * loss
    return jnp.mean(loss)


if __name__ == "__main__":
    key = jax.random.PRNGKey(0)
    k1, k2, k3, k4 = jax.random.split(key, 4)

    # Case 1: small-C lane-dense path (in-kernel relayout), single exact block.
    N, C = 64, 16
    logits = jax.random.normal(k1, (N, C), dtype=jnp.float32)
    targets = jax.random.randint(k2, (N,), 0, C, dtype=jnp.int32)
    out = jax.block_until_ready(focal_loss(logits, targets, gamma=2.0))
    ref = _focal_loss_ref(logits, targets, gamma=2.0)
    assert jnp.allclose(out, ref, rtol=1e-5, atol=1e-5), (out, ref)

    # Case 2: per-class alpha + label smoothing (algebraic smoothing path).
    alpha = jnp.linspace(0.5, 1.5, C, dtype=jnp.float32)
    out2 = jax.block_until_ready(
        focal_loss(logits, targets, alpha=alpha, gamma=2.0, label_smoothing=0.1))
    ref2 = _focal_loss_ref(logits, targets, alpha=alpha, gamma=2.0,
                           label_smoothing=0.1)
    assert jnp.allclose(out2, ref2, rtol=1e-5, atol=1e-5), (out2, ref2)

    # Case 3: large-C path with ragged N (unpadded edge block + mask).
    N3, C3 = 36, 256
    logits3 = jax.random.normal(k3, (N3, C3), dtype=jnp.float32)
    targets3 = jax.random.randint(k4, (N3,), 0, C3, dtype=jnp.int32)
    out3 = jax.block_until_ready(focal_loss(logits3, targets3, gamma=2.0))
    ref3 = _focal_loss_ref(logits3, targets3, gamma=2.0)
    assert jnp.allclose(out3, ref3, rtol=1e-5, atol=1e-5), (out3, ref3)

    # Case 4: small-C, multi-block, two parallel splits, clamped overhang block.
    N4, C4 = 600, 16
    logits4 = jax.random.normal(k1, (N4, C4), dtype=jnp.float32)
    targets4 = jax.random.randint(k2, (N4,), 0, C4, dtype=jnp.int32)
    out4 = jax.block_until_ready(focal_loss(logits4, targets4, gamma=2.0, tile_n=128))
    ref4 = _focal_loss_ref(logits4, targets4, gamma=2.0)
    assert jnp.allclose(out4, ref4, rtol=1e-5, atol=1e-5), (out4, ref4)

    # Case 5: large-C, multi-block with a partial final block (sum reduction too).
    N5, C5 = 300, 256
    logits5 = jax.random.normal(k3, (N5, C5), dtype=jnp.float32)
    targets5 = jax.random.randint(k4, (N5,), 0, C5, dtype=jnp.int32)
    out5 = jax.block_until_ready(
        focal_loss(logits5, targets5, gamma=2.0, tile_n=128, reduction="sum"))
    ref5 = _focal_loss_ref(logits5, targets5, gamma=2.0) * N5
    assert jnp.allclose(out5, ref5, rtol=1e-5, atol=1e-4), (out5, ref5)

    print("KERNEL_OK")
</pallas_src>

<mosaic_0001>
module attributes {stable_mosaic.version = 11 : i64} {
  func.func @kernel(%arg0: i32, %arg1: i32, %arg2: memref<64x16xf32, #tpu.memory_space<vmem>>, %arg3: memref<1x64xi32, #tpu.memory_space<vmem>>, %arg4: memref<8x128xf32, #tpu.memory_space<vmem>>, %arg5: memref<1x64xf32, #tpu.memory_space<vmem>>) attributes {dimension_semantics = [#tpu.dimension_semantics<parallel>, #tpu.dimension_semantics<arbitrary>], iteration_bounds = array<i64: 1, 1>, scalar_prefetch = 0 : i64, scratch_operands = 1 : i64, tpu.core_type = #tpu.core_type<tc>, window_params = [{transform_indices = @transform_0, window_bounds = array<i64: 64, 16>}, {transform_indices = @transform_1, window_bounds = array<i64: 1, 64>}, {transform_indices = @transform_2, window_bounds = array<i64: 8, 128>}]} {
    %c0_i32 = arith.constant 0 : i32
    %0 = arith.cmpi eq, %arg1, %c0_i32 : i32
    %1 = arith.extui %0 : i1 to i32
    %c0_i32_0 = arith.constant 0 : i32
    %2 = arith.cmpi ne, %1, %c0_i32_0 : i32
    scf.if %2 {
      %cst_16 = arith.constant 0.000000e+00 : f32
      %37 = vector.broadcast %cst_16 : f32 to vector<1x64xf32>
      %c0_17 = arith.constant 0 : index
      %c0_18 = arith.constant 0 : index
      %38 = vector.load %arg5[%c0_17, %c0_18] : memref<1x64xf32, #tpu.memory_space<vmem>>, vector<1x64xf32>
      tpu.vector_store %arg5[%c0_17, %c0_18], %37 {strides = array<i32>} : memref<1x64xf32, #tpu.memory_space<vmem>>, vector<1x64xf32>,
    } else {
    }
    %c0 = arith.constant 0 : index
    %c0_1 = arith.constant 0 : index
    %3 = vector.load %arg2[%c0, %c0_1] : memref<64x16xf32, #tpu.memory_space<vmem>>, vector<64x16xf32>
    %4 = tpu.transpose %3, [1, 0] : vector<64x16xf32> -> vector<16x64xf32>
    %c0_2 = arith.constant 0 : index
    %c0_3 = arith.constant 0 : index
    %5 = vector.load %arg3[%c0_2, %c0_3] : memref<1x64xi32, #tpu.memory_space<vmem>>, vector<1x64xi32>
    %cst = arith.constant dense<0xFF800000> : vector<64xf32>
    %6 = vector.multi_reduction <maximumf>, %4, %cst [0] : vector<16x64xf32> to vector<64xf32>
    %7 = vector.shape_cast %6 : vector<64xf32> to vector<1x64xf32>
    %8 = vector.broadcast %7 : vector<1x64xf32> to vector<16x64xf32>
    %9 = arith.subf %4, %8 : vector<16x64xf32>
    %10 = math.exp %9 : vector<16x64xf32>
    %cst_4 = arith.constant dense<0.000000e+00> : vector<64xf32>
    %11 = vector.multi_reduction <add>, %10, %cst_4 [0] : vector<16x64xf32> to vector<64xf32>
    %12 = vector.shape_cast %11 : vector<64xf32> to vector<1x64xf32>
    %13 = math.log %12 : vector<1x64xf32>
    %14 = tpu.iota {dimensions = array<i32: 0>} : vector<16x64xi32>
    %15 = vector.broadcast %5 : vector<1x64xi32> to vector<16x64xi32>
    %16 = arith.cmpi eq, %14, %15 : vector<16x64xi32>
    %cst_5 = arith.constant 0.000000e+00 : f32
    %17 = vector.broadcast %cst_5 : f32 to vector<16x64xf32>
    %18 = arith.select %16, %9, %17 : vector<16x64xi1>, vector<16x64xf32>
    %cst_6 = arith.constant dense<0.000000e+00> : vector<64xf32>
    %19 = vector.multi_reduction <add>, %18, %cst_6 [0] : vector<16x64xf32> to vector<64xf32>
    %20 = vector.shape_cast %19 : vector<64xf32> to vector<1x64xf32>
    %21 = arith.subf %20, %13 : vector<1x64xf32>
    %22 = math.exp %21 : vector<1x64xf32>
    %cst_7 = arith.constant 0.000000e+00 : f32
    %23 = vector.broadcast %cst_7 : f32 to vector<1x64xf32>
    %24 = arith.subf %23, %21 : vector<1x64xf32>
    %cst_8 = arith.constant 1.000000e+00 : f32
    %25 = vector.broadcast %cst_8 : f32 to vector<1x64xf32>
    %26 = arith.subf %25, %22 : vector<1x64xf32>
    %cst_9 = arith.constant 0.000000e+00 : f32
    %27 = vector.broadcast %cst_9 : f32 to vector<1x64xf32>
    %28 = arith.maximumf %26, %27 : vector<1x64xf32>
    %29 = arith.mulf %28, %28 : vector<1x64xf32>
    %30 = arith.mulf %29, %24 : vector<1x64xf32>
    %c0_10 = arith.constant 0 : index
    %c0_11 = arith.constant 0 : index
    %31 = vector.load %arg5[%c0_10, %c0_11] : memref<1x64xf32, #tpu.memory_space<vmem>>, vector<1x64xf32>
    %32 = arith.addf %31, %30 : vector<1x64xf32>
    %c0_12 = arith.constant 0 : index
    %c0_13 = arith.constant 0 : index
    %33 = vector.load %arg5[%c0_12, %c0_13] : memref<1x64xf32, #tpu.memory_space<vmem>>, vector<1x64xf32>
    tpu.vector_store %arg5[%c0_12, %c0_13], %32 {strides = array<i32>} : memref<1x64xf32, #tpu.memory_space<vmem>>, vector<1x64xf32>,
    %c0_i32_14 = arith.constant 0 : i32
    %34 = arith.cmpi eq, %arg1, %c0_i32_14 : i32
    %35 = arith.extui %34 : i1 to i32
    %c0_i32_15 = arith.constant 0 : i32
    %36 = arith.cmpi ne, %35, %c0_i32_15 : i32
    scf.if %36 {
      %c0_16 = arith.constant 0 : index
      %c0_17 = arith.constant 0 : index
      %37 = vector.load %arg5[%c0_16, %c0_17] : memref<1x64xf32, #tpu.memory_space<vmem>>, vector<1x64xf32>
      %38 = vector.shape_cast %37 : vector<1x64xf32> to vector<1x1x64xf32>
      %cst_18 = arith.constant dense<0.000000e+00> : vector<1xf32>
      %39 = vector.multi_reduction <add>, %38, %cst_18 [1, 2] : vector<1x1x64xf32> to vector<1xf32>
      %40 = vector.shape_cast %39 : vector<1xf32> to vector<1x1x1xf32>
      %41 = vector.extract %40[0, 0, 0] : f32 from vector<1x1x1xf32>
      %42 = tpu.iota {dimensions = array<i32: 0>} : vector<8x128xi32>
      %43 = tpu.iota {dimensions = array<i32: 1>} : vector<8x128xi32>
      %c0_i32_19 = arith.constant 0 : i32
      %44 = vector.broadcast %c0_i32_19 : i32 to vector<8x128xi32>
      %45 = arith.cmpi eq, %42, %44 : vector<8x128xi32>
      %c0_i32_20 = arith.constant 0 : i32
      %46 = vector.broadcast %c0_i32_20 : i32 to vector<8x128xi32>
      %47 = arith.cmpi eq, %43, %46 : vector<8x128xi32>
      %48 = arith.andi %45, %47 : vector<8x128xi1>
      %cst_21 = arith.constant 0.000000e+00 : f32
      %49 = vector.broadcast %41 : f32 to vector<8x128xf32>
      %50 = vector.broadcast %cst_21 : f32 to vector<8x128xf32>
      %51 = arith.select %48, %49, %50 : vector<8x128xi1>, vector<8x128xf32>
      %c0_22 = arith.constant 0 : index
      %c0_23 = arith.constant 0 : index
      %52 = vector.load %arg4[%c0_22, %c0_23] : memref<8x128xf32, #tpu.memory_space<vmem>>, vector<8x128xf32>
      tpu.vector_store %arg4[%c0_22, %c0_23], %51 {strides = array<i32>} : memref<8x128xf32, #tpu.memory_space<vmem>>, vector<8x128xf32>,
    } else {
    }
    return
  }
  func.func @transform_0(%arg0: i32, %arg1: i32) -> (i32, i32) {
    %c1_i32 = arith.constant 1 : i32
    %0 = arith.muli %arg0, %c1_i32 : i32
    %1 = arith.addi %0, %arg1 : i32
    %c0_i32 = arith.constant 0 : i32
    %2 = arith.minsi %1, %c0_i32 : i32
    %c0_i32_0 = arith.constant 0 : i32
    %c0_i32_1 = arith.constant 0 : i32
    return %2, %c0_i32_0 : i32, i32
  }
  func.func @transform_1(%arg0: i32, %arg1: i32) -> (i32, i32) {
    %c1_i32 = arith.constant 1 : i32
    %0 = arith.muli %arg0, %c1_i32 : i32
    %1 = arith.addi %0, %arg1 : i32
    %c0_i32 = arith.constant 0 : i32
    %c0_i32_0 = arith.constant 0 : i32
    return %c0_i32, %1 : i32, i32
  }
  func.func @transform_2(%arg0: i32, %arg1: i32) -> (i32, i32) {
    %c0_i32 = arith.constant 0 : i32
    %c0_i32_0 = arith.constant 0 : i32
    return %arg0, %c0_i32 : i32, i32
  }
}

</mosaic_0001>

<llo_original>
// kernel: tpu_custom_call.1
$region0: #{tpu_custom_call.1}
  #allocation0 [shape = 'u32[]', space=smem, size = 0x4, offset = 0x4, fixed_abs, tag = 'smem constant byte address 0x4 - core index']
  #allocation1 [shape = 'u32[144,128]{1,0:T(1,128)}', space=vmem, size = 0x12000, scoped, tag = 'internal scratch']
  #allocation2 [shape = 'f32[1,64]{1,0:T(1,128)}', space=vmem, size = 0x200, scoped, tag = 'scratch operand']
  %s0 = inlined_call_operand.vmem [shape: f32[64,16], index: 0, kind: input, shape index: {}]
  %s1 = inlined_call_operand.vmem [shape: s32[1,64], index: 1, kind: input, shape index: {}]
  %s2 = inlined_call_operand.hbm [shape: f32[8,128], index: 2, kind: output, shape index: {}]
  %s3 = sld [smem:[#allocation0]]
  $region26: #{tpu_custom_call.1} parent=0
    _
  %s5 = ssub.s32 1, %s3
  %s6 = scalar_select 0, %s5, %s3
  $region1: #{tpu_custom_call.1} parent=0
    #allocation3 [shape = 'u8[4096]{0}', space=vmem, size = 0x1000, scoped, tag = 'output window, operand 0, single buffered']
    #allocation4 [shape = 's32[1]{0}', space=sflag, size = 0x4, scoped, tag = 'scoped memory for tpu_custom_call.1']
    %7 = vsyncpa [#allocation4], 0
    // Predicated region
    $region2: #{tpu_custom_call.1} parent=1 // pred_check
      _
    $region3: #{tpu_custom_call.1} parent=1 // pred_check_branch
      %9 = sbr.rel (0) target = $region5
    $region4: #{tpu_custom_call.1} parent=1 // pred_region
      %s10 = sadd.s32 0, 0
      %p11 = scmp.lt.s32.totalorder %s10, 0
      %s12 = scalar_select %p11, %s10, 0
      %s13 = smul.u32 8, %s12
      %p14 = scmp.lt.s32.totalorder %s13, 7
      %s15 = scalar_select %p14, %s13, 7
      %s16 = smul.addr %s15, 8
      %s17 = scalar_lea.vmem %s0, %s16
      %s18 = sadd.s32 0, 0
      %p19 = scmp.lt.s32.totalorder %s18, 0
      %s20 = scalar_select %p19, %s18, 0
      %s21 = smul.u32 8, %s20
    $region5: #{tpu_custom_call.1} parent=1 // pred_fallthru
      _
    // Predicated region
    $region6: #{tpu_custom_call.1} parent=1 // pred_check
      _
    $region7: #{tpu_custom_call.1} parent=1 // pred_check_branch
      %23 = sbr.rel (0) target = $region9
    $region8: #{tpu_custom_call.1} parent=1 // pred_region
      %s24 = sadd.s32 0, 0
      %p25 = scmp.lt.s32.totalorder %s24, 0
      %s26 = scalar_select %p25, %s24, 0
      %s27 = scalar_lea.vmem %s1, %s26
      %s28 = sadd.s32 0, 0
    $region9: #{tpu_custom_call.1} parent=1 // pred_fallthru
      _
    %s29 = sadd.s32 0, 0
    %p30 = scmp.lt.s32.totalorder %s29, 0
    %s31 = scalar_select %p30, %s29, 0
    %s32 = smul.u32 8, %s31
    %p33 = scmp.lt.s32.totalorder %s32, 7
    %s34 = scalar_select %p33, %s32, 7
    %s35 = smul.addr %s34, 8
    %s36 = scalar_lea.vmem %s0, %s35
    %s37 = sadd.s32 0, 0
    %p38 = scmp.lt.s32.totalorder %s37, 0
    %s39 = scalar_select %p38, %s37, 0
    %s40 = scalar_lea.vmem %s1, %s39
    %s41 = sadd.s32 0, 0
    %p42 = scmp.lt.s32.totalorder %s41, 0
    %s43 = scalar_select %p42, %s41, 0
    %s44 = smul.u32 8, %s43
    %p45 = scmp.lt.s32.totalorder %s44, 7
    %s46 = scalar_select %p45, %s44, 7
    %s47 = smul.addr %s46, 8
    %s48 = scalar_lea.vmem %s0, %s47
    %s49 = sadd.s32 0, 0
    %p50 = scmp.lt.s32.totalorder %s49, 0
    %s51 = scalar_select %p50, %s49, 0
    %s52 = smul.u32 8, %s51
    %s53 = sadd.s32 0, 0
    %p54 = scmp.lt.s32.totalorder %s53, 0
    %s55 = scalar_select %p54, %s53, 0
    %s56 = scalar_lea.vmem %s1, %s55
    %s57 = sadd.s32 0, 0
    %p58 = scmp.eq.s32.totalorder 0, 0
    // Predicated region
    $region10: #{tpu_custom_call.1} parent=1 // pred_check
      %p59 = pneg %p58
    $region11: #{tpu_custom_call.1} parent=1 // pred_check_branch
      %61 = sbr.rel (%p59) target = $region13
    $region12: #{tpu_custom_call.1} parent=1 // pred_region
      %vm62 = vcmask 516096
      %63 = vst.msk [vmem:[#allocation2] sm:$0x1] %vm62, 0.0
    $region13: #{tpu_custom_call.1} parent=1 // pred_fallthru
      _
    %v64 = vld [vmem:[%s48] sm:$0xff]
    %v65 = vld [vmem:[%s48 + $0x8] sm:$0xff]
    %v66 = vld [vmem:[%s48 + $0x10] sm:$0xff]
    %v67 = vld [vmem:[%s48 + $0x18] sm:$0xff]
    %v68 = vld [vmem:[%s48 + $0x20] sm:$0xff]
    %v69 = vld [vmem:[%s48 + $0x28] sm:$0xff]
    %v70 = vld [vmem:[%s48 + $0x30] sm:$0xff]
    %v71 = vld [vmem:[%s48 + $0x38] sm:$0xff]
    %72 = vxpose.xlu0.b32.start [1/16] %v64, 128
    %73 = vxpose.xlu0.b32.cont [2/16] %v65, 128
    %74 = vxpose.xlu0.b32.cont [3/16] %v66, 128
    %75 = vxpose.xlu0.b32.cont [4/16] %v67, 128
    %76 = vxpose.xlu0.b32.cont [5/16] %v68, 128
    %77 = vxpose.xlu0.b32.cont [6/16] %v69, 128
    %78 = vxpose.xlu0.b32.cont [7/16] %v70, 128
    %79 = vxpose.xlu0.b32.cont [8/16] %v71, 128
    %80 = vxpose.xlu0.b32.cont [9/16] 0.0, 128
    %81 = vxpose.xlu0.b32.cont [10/16] 0.0, 128
    %82 = vxpose.xlu0.b32.cont [11/16] 0.0, 128
    %83 = vxpose.xlu0.b32.cont [12/16] 0.0, 128
    %84 = vxpose.xlu0.b32.cont [13/16] 0.0, 128
    %85 = vxpose.xlu0.b32.cont [14/16] 0.0, 128
    %86 = vxpose.xlu0.b32.cont [15/16] 0.0, 128
    %87 = vxpose.xlu0.b32.end [16/16] 0.0, 128
    %v88 = vpop.trf.xlu0
    %v89 = vpop.trf.xlu0
    %v90 = vpop.trf.xlu0
    %v91 = vpop.trf.xlu0
    %v92 = vpop.trf.xlu0
    %v93 = vpop.trf.xlu0
    %v94 = vpop.trf.xlu0
    %v95 = vpop.trf.xlu0
    %v96 = vpop.trf.xlu0
    %v97 = vpop.trf.xlu0
    %v98 = vpop.trf.xlu0
    %v99 = vpop.trf.xlu0
    %v100 = vpop.trf.xlu0
    %v101 = vpop.trf.xlu0
    %v102 = vpop.trf.xlu0
    %v103 = vpop.trf.xlu0
    %v104 = vld [vmem:[%s56] sm:$0x1]
    %vm105 = vcmask 523264
    %v106 = vsel %vm105, %v88, -inf
    %v107 = vsel %vm105, %v89, -inf
    %v108 = vmax.f32 %v106, %v107
    %v109 = vrot.slane %v108, 4
    %v110 = vmax.f32 %v108, %v109
    %v111 = vrot.slane %v110, 2
    %v112 = vmax.f32 %v110, %v111
    %v113 = vrot.slane %v112, 1
    %v114 = vmax.f32 %v112, %v113
    %v115 = vsub.f32 %v88, %v114
    %v116 = vsub.f32 %v89, %v114
    %v117 = vmul.f32 %v115, 1.442695
    %v118 = vpow.pop %v117
    %v119 = vmul.f32 %v116, 1.442695
    %v120 = vpow.pop %v119
    %v121 = vsel %vm105, %v118, 0.0
    %v122 = vsel %vm105, %v120, 0.0
    %v123 = vadd.f32 %v121, %v122
    %v124 = vrot.slane %v123, 4
    %v125 = vadd.f32 %v123, %v124
    %v126 = vrot.slane %v125, 2
    %v127 = vadd.f32 %v125, %v126
    %v128 = vrot.slane %v127, 1
    %v129 = vadd.f32 %v127, %v128
    %v130 = vlog2.pop %v129
    %v131 = vmul.f32 %v130, 0.6931472
    %v132 = vlaneseq
    %v133 = vshrl.u32 %v132, 7
    %v134 = vadd.s32 %v133, 8
    %v135 = vlaneseq
    %v136 = vshrl.u32 %v135, 7
    %v137 = vsub.s32 0, %v136
    %v138 = vrot.slane %v104, %v137
    %vm139 = vcmp.eq.s32.totalorder %v133, %v138
    %vm140 = vcmp.eq.s32.totalorder %v134, %v138
    %v141 = vsel %vm139, %v115, 0.0
    %v142 = vsel %vm140, %v116, 0.0
    %v143 = vsel %vm105, %v141, 0.0
    %v144 = vsel %vm105, %v142, 0.0
    %v145 = vadd.f32 %v143, %v144
    %v146 = vrot.slane %v145, 4
    %v147 = vadd.f32 %v145, %v146
    %v148 = vrot.slane %v147, 2
    %v149 = vadd.f32 %v147, %v148
    %v150 = vrot.slane %v149, 1
    %v151 = vadd.f32 %v149, %v150
    %v152 = vsub.f32 %v151, %v131
    %v153 = vmul.f32 %v152, 1.442695
    %v154 = vpow.pop %v153
    %v155 = vsub.f32 0.0, %v152
    %v156 = vsub.f32 1.0, %v154
    %v157 = vmax.f32 %v156, 0.0
    %v158 = vmul.f32 %v157, %v157
    %v159 = vmul.f32 %v158, %v155
    %v160 = vld [vmem:[#allocation2] sm:$0x1]
    %v161 = vadd.f32 %v160, %v159
    %vm162 = vcmask 516096
    %163 = vst.msk [vmem:[#allocation2] sm:$0x1] %vm162, %v161
    // Predicated region
    $region14: #{tpu_custom_call.1} parent=1 // pred_check
      %p164 = pneg %p58
    $region15: #{tpu_custom_call.1} parent=1 // pred_check_branch
      %166 = sbr.rel (%p164) target = $region17
    $region16: #{tpu_custom_call.1} parent=1 // pred_region
      %v167 = vld [vmem:[#allocation2] sm:$0x1]
      %v168 = vsel %vm162, %v167, 0.0
      %169 = vadd.xlane.f32.xlu0 %v168
      %v170 = vpop.xlane.xlu0 %169
      %v171 = vrot.slane %v170, 4
      %v172 = vadd.f32 %v170, %v171
      %v173 = vrot.slane %v172, 2
      %v174 = vadd.f32 %v172, %v173
      %v175 = vrot.slane %v174, 1
      %v176 = vadd.f32 %v174, %v175
      %s177 = vtos %v176
      %v178 = vlaneseq
      %v179 = vand.u32 %v178, 127
      %vm180 = vcmp.eq.s32.totalorder %v133, 0
      %vm181 = vcmp.eq.s32.totalorder %v179, 0
      %vm182 = vmand %vm180, %vm181
      %v183 = vstv %s177
      %v184 = vsel %vm182, %v183, 0.0
      %185 = vst [vmem:[#allocation3] sm:$0xff] %v184
    $region17: #{tpu_custom_call.1} parent=1 // pred_fallthru
      _
    // Predicated region
    $region18: #{tpu_custom_call.1} parent=1 // pred_check
      _
    $region19: #{tpu_custom_call.1} parent=1 // pred_check_branch
      %187 = sbr.rel (0) target = $region21
    $region20: #{tpu_custom_call.1} parent=1 // pred_region
      %s189 = ssub.s32 128, 128
      %190 = vsyncadd [#allocation4], %s189
      %s192 = sshll.u32 [#allocation3], 4
      %s193 = int_to_ptr.vmem [resolvable:$true] %s192
      %195 = dma.vmem_to_hbm [thread:$0]  %s193, 128, %s2, [#allocation4]
    $region21: #{tpu_custom_call.1} parent=1 // pred_fallthru
      _
    // Predicated region
    $region22: #{tpu_custom_call.1} parent=1 // pred_check
      _
    $region23: #{tpu_custom_call.1} parent=1 // pred_check_branch
      %197 = sbr.rel (0) target = $region25
    $region24: #{tpu_custom_call.1} parent=1 // pred_region
      %198 = dma.done [#allocation4], 128
    $region25: #{tpu_custom_call.1} parent=1 // pred_fallthru
      _
    %199 = vsyncpa [#allocation4], 1

</llo_original>
